<compile_context>
chip_gen: v5e
topology: v5e:2x2
jax: 0.10.0
libtpu: 0.0.40
codegen_flags: <defaults>
</compile_context>

<pallas_src>
import jax
import jax.numpy as jnp
from jax import lax
from jax.experimental import pallas as pl
from jax.experimental.pallas import tpu as pltpu

LN_EPS = 1e-5  # nn.LayerNorm default


def _round_up(n, m):
    return ((n + m - 1) // m) * m


def _layernorm(h, gamma, beta):
    mean = jnp.mean(h, axis=-1, keepdims=True)
    cen = h - mean
    var = jnp.mean(cen * cen, axis=-1, keepdims=True)
    return cen * lax.rsqrt(var + LN_EPS) * gamma + beta


def actor_kernel(x_ref,
                 w1_ref, p1_ref,      # p1 = [b1; gamma1; beta1]  (3, fc1_dim)
                 w2_ref, p2_ref,      # p2 = [b2; gamma2; beta2]  (3, fc2_dim)
                 wmu_ref, bmu_ref,    # mu weight/bias, lanes padded to 128-mult
                 out_ref):
    # Elementwise chain kept in f32 (v5e has no bf16 VPU/EUP path);
    # matmuls accumulate in f32 regardless of stored weight dtype.
    x = x_ref[...].astype(jnp.float32)

    # fc1 -> LayerNorm -> ReLU
    h = jnp.dot(x, w1_ref[...], preferred_element_type=jnp.float32) + p1_ref[0:1, :]
    h = jnp.maximum(_layernorm(h, p1_ref[1:2, :], p1_ref[2:3, :]), 0.0)

    # fc2 -> LayerNorm -> ReLU
    h = jnp.dot(h, w2_ref[...], preferred_element_type=jnp.float32) + p2_ref[0:1, :]
    h = jnp.maximum(_layernorm(h, p2_ref[1:2, :], p2_ref[2:3, :]), 0.0)

    # mu -> tanh  (padding columns of wmu/bmu are zero -> tanh(0) = 0, discarded later)
    h = jnp.dot(h, wmu_ref[...], preferred_element_type=jnp.float32) + bmu_ref[...]
    out_ref[...] = jnp.tanh(h).astype(out_ref.dtype)


def init_actor_params(key, input_dim, fc1_dim, fc2_dim, n_actions):
    """Deterministic init mirroring Actor.init_weights (uniform bounds).
    Weights are stored (in, out) so the kernel computes x @ W + b."""
    ks = jax.random.split(key, 6)
    f1 = 1.0 / jnp.sqrt(float(fc1_dim))   # torch: weight.size()[0] == out_features
    f2 = 1.0 / jnp.sqrt(float(fc2_dim))
    f3 = 0.003

    def u(k, shape, f):
        return jax.random.uniform(k, shape, jnp.float32, minval=-f, maxval=f)

    return {
        "w1": u(ks[0], (input_dim, fc1_dim), f1),
        "b1": u(ks[1], (1, fc1_dim), f1),
        "g1": jnp.ones((1, fc1_dim), jnp.float32),
        "be1": jnp.zeros((1, fc1_dim), jnp.float32),
        "w2": u(ks[2], (fc1_dim, fc2_dim), f2),
        "b2": u(ks[3], (1, fc2_dim), f2),
        "g2": jnp.ones((1, fc2_dim), jnp.float32),
        "be2": jnp.zeros((1, fc2_dim), jnp.float32),
        "w_mu": u(ks[4], (fc2_dim, n_actions), f3),
        "b_mu": u(ks[5], (1, n_actions), f3),
    }


def pack_actor_params(p, param_dtype=jnp.float32):
    """Pack parameters into kernel-ready form.

    param_dtype=jnp.bfloat16 halves weight DMA bytes (recommended on v6e/v7x);
    LayerNorm scale/shift and biases stay f32 (elementwise path)."""
    n_actions = p["w_mu"].shape[1]
    n_pad = _round_up(max(n_actions, 128), 128)   # lane-dense output width
    pad = n_pad - n_actions
    return {
        "w1": p["w1"].astype(param_dtype),
        "p1": jnp.concatenate([p["b1"], p["g1"], p["be1"]], axis=0).astype(jnp.float32),
        "w2": p["w2"].astype(param_dtype),
        "p2": jnp.concatenate([p["b2"], p["g2"], p["be2"]], axis=0).astype(jnp.float32),
        "w_mu": jnp.pad(p["w_mu"], ((0, 0), (0, pad))).astype(param_dtype),
        "b_mu": jnp.pad(p["b_mu"], ((0, 0), (0, pad))).astype(jnp.float32),
        "n_actions": n_actions,
    }


def actor_forward(x, packed, *, block_b=256):
    """x: [B, input_dim] float32. packed: output of pack_actor_params."""
    B, input_dim = x.shape
    w1, p1 = packed["w1"], packed["p1"]
    w2, p2 = packed["w2"], packed["p2"]
    wmu, bmu = packed["w_mu"], packed["b_mu"]
    n_actions = packed["n_actions"]
    fc1_dim = w1.shape[1]
    fc2_dim = w2.shape[1]
    n_pad = wmu.shape[1]

    # Batch tile: multiple of 8 sublanes; <= block_b rows per step.
    # (block_b=256 keeps per-step activation tiles small enough for v7x's
    #  64 MiB VMEM even with wide hidden dims.)
    bb = min(block_b, _round_up(B, 8))
    Bp = _round_up(B, bb)
    if Bp != B:
        x = jnp.pad(x, ((0, Bp - B), (0, 0)))

    grid = (Bp // bb,)
    args = (x, w1, p1, w2, p2, wmu, bmu)

    def const_spec(a):
        # Whole (small) parameter resident in VMEM across all grid steps.
        return pl.BlockSpec(a.shape, lambda i: (0,) * a.ndim)

    in_specs = [
        pl.BlockSpec((bb, input_dim), lambda i: (i, 0)),   # x: tiled over batch
        const_spec(w1), const_spec(p1),
        const_spec(w2), const_spec(p2),
        const_spec(wmu), const_spec(bmu),
    ]

    out = pl.pallas_call(
        actor_kernel,
        out_shape=jax.ShapeDtypeStruct((Bp, n_pad), jnp.float32),
        grid=grid,
        in_specs=in_specs,
        out_specs=pl.BlockSpec((bb, n_pad), lambda i: (i, 0)),
        compiler_params=pltpu.CompilerParams(
            dimension_semantics=("parallel",)),   # v7x: shard batch over 2 TCs
    )(*args)

    return out[:B, :n_actions]


def actor_forward_ref(x, p):
    """Pure-JAX reference for correctness (uses unpacked f32 params)."""
    def ln(h, g, b):
        m = jnp.mean(h, axis=-1, keepdims=True)
        v = jnp.mean((h - m) ** 2, axis=-1, keepdims=True)
        return (h - m) / jnp.sqrt(v + LN_EPS) * g + b

    h = jnp.maximum(ln(x @ p["w1"] + p["b1"], p["g1"], p["be1"]), 0.0)
    h = jnp.maximum(ln(h @ p["w2"] + p["b2"], p["g2"], p["be2"]), 0.0)
    return jnp.tanh(h @ p["w_mu"] + p["b_mu"])


if __name__ == "__main__":
    key = jax.random.PRNGKey(0)
    k_x, k_p = jax.random.split(key)

    B, input_dim, fc1_dim, fc2_dim, n_actions = 8, 16, 32, 32, 8
    x = jax.random.normal(k_x, (B, input_dim), jnp.float32)
    params = init_actor_params(k_p, input_dim, fc1_dim, fc2_dim, n_actions)
    ref = actor_forward_ref(x, params)

    # f32 weights (bit-faithful path, all generations)
    packed_f32 = pack_actor_params(params, param_dtype=jnp.float32)
    out = jax.block_until_ready(actor_forward(x, packed_f32))
    assert out.shape == (B, n_actions)
    assert jnp.allclose(out, ref, atol=1e-5, rtol=1e-5), "f32 mismatch vs reference"

    # bf16 weights (v6e/v7x bandwidth optimization; f32 accumulation/elementwise)
    packed_bf16 = pack_actor_params(params, param_dtype=jnp.bfloat16)
    out_bf16 = jax.block_until_ready(actor_forward(x, packed_bf16))
    assert out_bf16.shape == (B, n_actions)
    assert jnp.allclose(out_bf16, ref, atol=5e-2, rtol=5e-2), "bf16 mismatch vs reference"

    print("KERNEL_OK")
</pallas_src>

<mosaic_0001>
module attributes {stable_mosaic.version = 11 : i64} {
  func.func @actor_kernel(%arg0: i32, %arg1: memref<8x16xf32, #tpu.memory_space<vmem>>, %arg2: memref<16x32xf32, #tpu.memory_space<vmem>>, %arg3: memref<3x32xf32, #tpu.memory_space<vmem>>, %arg4: memref<32x32xf32, #tpu.memory_space<vmem>>, %arg5: memref<3x32xf32, #tpu.memory_space<vmem>>, %arg6: memref<32x128xf32, #tpu.memory_space<vmem>>, %arg7: memref<1x128xf32, #tpu.memory_space<vmem>>, %arg8: memref<8x128xf32, #tpu.memory_space<vmem>>) attributes {dimension_semantics = [#tpu.dimension_semantics<parallel>], iteration_bounds = array<i64: 1>, scalar_prefetch = 0 : i64, scratch_operands = 0 : i64, tpu.core_type = #tpu.core_type<tc>, window_params = [{transform_indices = @transform_0, window_bounds = array<i64: 8, 16>}, {pipeline_mode = #tpu.pipeline_mode<synchronous>, transform_indices = @transform_1, window_bounds = array<i64: 16, 32>}, {pipeline_mode = #tpu.pipeline_mode<synchronous>, transform_indices = @transform_2, window_bounds = array<i64: 3, 32>}, {pipeline_mode = #tpu.pipeline_mode<synchronous>, transform_indices = @transform_3, window_bounds = array<i64: 32, 32>}, {pipeline_mode = #tpu.pipeline_mode<synchronous>, transform_indices = @transform_4, window_bounds = array<i64: 3, 32>}, {pipeline_mode = #tpu.pipeline_mode<synchronous>, transform_indices = @transform_5, window_bounds = array<i64: 32, 128>}, {pipeline_mode = #tpu.pipeline_mode<synchronous>, transform_indices = @transform_6, window_bounds = array<i64: 1, 128>}, {transform_indices = @transform_7, window_bounds = array<i64: 8, 128>}]} {
    %c0 = arith.constant 0 : index
    %c0_0 = arith.constant 0 : index
    %0 = vector.load %arg1[%c0, %c0_0] : memref<8x16xf32, #tpu.memory_space<vmem>>, vector<8x16xf32>
    %c0_1 = arith.constant 0 : index
    %c0_2 = arith.constant 0 : index
    %1 = vector.load %arg2[%c0_1, %c0_2] : memref<16x32xf32, #tpu.memory_space<vmem>>, vector<16x32xf32>
    %cst = arith.constant dense<0.000000e+00> : vector<8x32xf32>
    %2 = tpu.matmul %0, %1, %cst {dimension_numbers = #tpu.dot_dimension_numbers<[1], [0], [0], [1], [0, 0, 1, 1], [], []>} : vector<8x16xf32>, vector<16x32xf32>, vector<8x32xf32> -> vector<8x32xf32>
    %c0_3 = arith.constant 0 : index
    %c0_4 = arith.constant 0 : index
    %3 = vector.load %arg3[%c0_3, %c0_4] : memref<3x32xf32, #tpu.memory_space<vmem>>, vector<1x32xf32>
    %4 = vector.broadcast %3 : vector<1x32xf32> to vector<8x32xf32>
    %5 = arith.addf %2, %4 : vector<8x32xf32>
    %c1 = arith.constant 1 : index
    %c0_5 = arith.constant 0 : index
    %6 = vector.load %arg3[%c1, %c0_5] : memref<3x32xf32, #tpu.memory_space<vmem>>, vector<1x32xf32>
    %c2 = arith.constant 2 : index
    %c0_6 = arith.constant 0 : index
    %7 = vector.load %arg3[%c2, %c0_6] : memref<3x32xf32, #tpu.memory_space<vmem>>, vector<1x32xf32>
    %cst_7 = arith.constant dense<0.000000e+00> : vector<8xf32>
    %8 = vector.multi_reduction <add>, %5, %cst_7 [1] : vector<8x32xf32> to vector<8xf32>
    %9 = vector.shape_cast %8 : vector<8xf32> to vector<8x1xf32>
    %cst_8 = arith.constant 3.200000e+01 : f32
    %10 = vector.broadcast %cst_8 : f32 to vector<8x1xf32>
    %11 = arith.divf %9, %10 : vector<8x1xf32>
    %12 = vector.broadcast %11 : vector<8x1xf32> to vector<8x32xf32>
    %13 = arith.subf %5, %12 : vector<8x32xf32>
    %14 = arith.mulf %13, %13 : vector<8x32xf32>
    %cst_9 = arith.constant dense<0.000000e+00> : vector<8xf32>
    %15 = vector.multi_reduction <add>, %14, %cst_9 [1] : vector<8x32xf32> to vector<8xf32>
    %16 = vector.shape_cast %15 : vector<8xf32> to vector<8x1xf32>
    %cst_10 = arith.constant 3.200000e+01 : f32
    %17 = vector.broadcast %cst_10 : f32 to vector<8x1xf32>
    %18 = arith.divf %16, %17 : vector<8x1xf32>
    %cst_11 = arith.constant 9.99999974E-6 : f32
    %19 = vector.broadcast %cst_11 : f32 to vector<8x1xf32>
    %20 = arith.addf %18, %19 : vector<8x1xf32>
    %21 = math.rsqrt %20 : vector<8x1xf32>
    %22 = vector.broadcast %21 : vector<8x1xf32> to vector<8x32xf32>
    %23 = arith.mulf %13, %22 : vector<8x32xf32>
    %24 = vector.broadcast %6 : vector<1x32xf32> to vector<8x32xf32>
    %25 = arith.mulf %23, %24 : vector<8x32xf32>
    %26 = vector.broadcast %7 : vector<1x32xf32> to vector<8x32xf32>
    %27 = arith.addf %25, %26 : vector<8x32xf32>
    %cst_12 = arith.constant 0.000000e+00 : f32
    %28 = vector.broadcast %cst_12 : f32 to vector<8x32xf32>
    %29 = arith.maximumf %27, %28 : vector<8x32xf32>
    %c0_13 = arith.constant 0 : index
    %c0_14 = arith.constant 0 : index
    %30 = vector.load %arg4[%c0_13, %c0_14] : memref<32x32xf32, #tpu.memory_space<vmem>>, vector<32x32xf32>
    %cst_15 = arith.constant dense<0.000000e+00> : vector<8x32xf32>
    %31 = tpu.matmul %29, %30, %cst_15 {dimension_numbers = #tpu.dot_dimension_numbers<[1], [0], [0], [1], [0, 0, 1, 1], [], []>} : vector<8x32xf32>, vector<32x32xf32>, vector<8x32xf32> -> vector<8x32xf32>
    %c0_16 = arith.constant 0 : index
    %c0_17 = arith.constant 0 : index
    %32 = vector.load %arg5[%c0_16, %c0_17] : memref<3x32xf32, #tpu.memory_space<vmem>>, vector<1x32xf32>
    %33 = vector.broadcast %32 : vector<1x32xf32> to vector<8x32xf32>
    %34 = arith.addf %31, %33 : vector<8x32xf32>
    %c1_18 = arith.constant 1 : index
    %c0_19 = arith.constant 0 : index
    %35 = vector.load %arg5[%c1_18, %c0_19] : memref<3x32xf32, #tpu.memory_space<vmem>>, vector<1x32xf32>
    %c2_20 = arith.constant 2 : index
    %c0_21 = arith.constant 0 : index
    %36 = vector.load %arg5[%c2_20, %c0_21] : memref<3x32xf32, #tpu.memory_space<vmem>>, vector<1x32xf32>
    %cst_22 = arith.constant dense<0.000000e+00> : vector<8xf32>
    %37 = vector.multi_reduction <add>, %34, %cst_22 [1] : vector<8x32xf32> to vector<8xf32>
    %38 = vector.shape_cast %37 : vector<8xf32> to vector<8x1xf32>
    %cst_23 = arith.constant 3.200000e+01 : f32
    %39 = vector.broadcast %cst_23 : f32 to vector<8x1xf32>
    %40 = arith.divf %38, %39 : vector<8x1xf32>
    %41 = vector.broadcast %40 : vector<8x1xf32> to vector<8x32xf32>
    %42 = arith.subf %34, %41 : vector<8x32xf32>
    %43 = arith.mulf %42, %42 : vector<8x32xf32>
    %cst_24 = arith.constant dense<0.000000e+00> : vector<8xf32>
    %44 = vector.multi_reduction <add>, %43, %cst_24 [1] : vector<8x32xf32> to vector<8xf32>
    %45 = vector.shape_cast %44 : vector<8xf32> to vector<8x1xf32>
    %cst_25 = arith.constant 3.200000e+01 : f32
    %46 = vector.broadcast %cst_25 : f32 to vector<8x1xf32>
    %47 = arith.divf %45, %46 : vector<8x1xf32>
    %cst_26 = arith.constant 9.99999974E-6 : f32
    %48 = vector.broadcast %cst_26 : f32 to vector<8x1xf32>
    %49 = arith.addf %47, %48 : vector<8x1xf32>
    %50 = math.rsqrt %49 : vector<8x1xf32>
    %51 = vector.broadcast %50 : vector<8x1xf32> to vector<8x32xf32>
    %52 = arith.mulf %42, %51 : vector<8x32xf32>
    %53 = vector.broadcast %35 : vector<1x32xf32> to vector<8x32xf32>
    %54 = arith.mulf %52, %53 : vector<8x32xf32>
    %55 = vector.broadcast %36 : vector<1x32xf32> to vector<8x32xf32>
    %56 = arith.addf %54, %55 : vector<8x32xf32>
    %cst_27 = arith.constant 0.000000e+00 : f32
    %57 = vector.broadcast %cst_27 : f32 to vector<8x32xf32>
    %58 = arith.maximumf %56, %57 : vector<8x32xf32>
    %c0_28 = arith.constant 0 : index
    %c0_29 = arith.constant 0 : index
    %59 = vector.load %arg6[%c0_28, %c0_29] : memref<32x128xf32, #tpu.memory_space<vmem>>, vector<32x128xf32>
    %cst_30 = arith.constant dense<0.000000e+00> : vector<8x128xf32>
    %60 = tpu.matmul %58, %59, %cst_30 {dimension_numbers = #tpu.dot_dimension_numbers<[1], [0], [0], [1], [0, 0, 1, 1], [], []>} : vector<8x32xf32>, vector<32x128xf32>, vector<8x128xf32> -> vector<8x128xf32>
    %c0_31 = arith.constant 0 : index
    %c0_32 = arith.constant 0 : index
    %61 = vector.load %arg7[%c0_31, %c0_32] : memref<1x128xf32, #tpu.memory_space<vmem>>, vector<1x128xf32>
    %62 = vector.broadcast %61 : vector<1x128xf32> to vector<8x128xf32>
    %63 = arith.addf %60, %62 : vector<8x128xf32>
    %64 = math.tanh %63 : vector<8x128xf32>
    %c0_33 = arith.constant 0 : index
    %c0_34 = arith.constant 0 : index
    %65 = vector.load %arg8[%c0_33, %c0_34] : memref<8x128xf32, #tpu.memory_space<vmem>>, vector<8x128xf32>
    tpu.vector_store %arg8[%c0_33, %c0_34], %64 {strides = array<i32>} : memref<8x128xf32, #tpu.memory_space<vmem>>, vector<8x128xf32>,
    return
  }
  func.func @transform_0(%arg0: i32) -> (i32, i32) {
    %c0_i32 = arith.constant 0 : i32
    %c0_i32_0 = arith.constant 0 : i32
    return %arg0, %c0_i32 : i32, i32
  }
  func.func @transform_1(%arg0: i32) -> (i32, i32) {
    %c0_i32 = arith.constant 0 : i32
    %c0_i32_0 = arith.constant 0 : i32
    %c0_i32_1 = arith.constant 0 : i32
    return %c0_i32, %c0_i32_0 : i32, i32
  }
  func.func @transform_2(%arg0: i32) -> (i32, i32) {
    %c0_i32 = arith.constant 0 : i32
    %c0_i32_0 = arith.constant 0 : i32
    %c0_i32_1 = arith.constant 0 : i32
    return %c0_i32, %c0_i32_0 : i32, i32
  }
  func.func @transform_3(%arg0: i32) -> (i32, i32) {
    %c0_i32 = arith.constant 0 : i32
    %c0_i32_0 = arith.constant 0 : i32
    %c0_i32_1 = arith.constant 0 : i32
    return %c0_i32, %c0_i32_0 : i32, i32
  }
  func.func @transform_4(%arg0: i32) -> (i32, i32) {
    %c0_i32 = arith.constant 0 : i32
    %c0_i32_0 = arith.constant 0 : i32
    %c0_i32_1 = arith.constant 0 : i32
    return %c0_i32, %c0_i32_0 : i32, i32
  }
  func.func @transform_5(%arg0: i32) -> (i32, i32) {
    %c0_i32 = arith.constant 0 : i32
    %c0_i32_0 = arith.constant 0 : i32
    %c0_i32_1 = arith.constant 0 : i32
    return %c0_i32, %c0_i32_0 : i32, i32
  }
  func.func @transform_6(%arg0: i32) -> (i32, i32) {
    %c0_i32 = arith.constant 0 : i32
    %c0_i32_0 = arith.constant 0 : i32
    %c0_i32_1 = arith.constant 0 : i32
    return %c0_i32, %c0_i32_0 : i32, i32
  }
  func.func @transform_7(%arg0: i32) -> (i32, i32) {
    %c0_i32 = arith.constant 0 : i32
    %c0_i32_0 = arith.constant 0 : i32
    return %arg0, %c0_i32 : i32, i32
  }
}

</mosaic_0001>

<llo_original>
// kernel: tpu_custom_call.1
$region0: #{tpu_custom_call.1}
  #allocation0 [shape = 'u32[]', space=smem, size = 0x4, offset = 0x4, fixed_abs, tag = 'smem constant byte address 0x4 - core index']
  #allocation1 [shape = 'u32[72,128]{1,0:T(1,128)}', space=vmem, size = 0x9000, scoped, tag = 'internal scratch']
  %s0 = inlined_call_operand.hbm [shape: f32[8,16], index: 0, kind: input, shape index: {}]
  %s1 = inlined_call_operand.hbm [shape: f32[16,32], index: 1, kind: input, shape index: {}]
  %s2 = inlined_call_operand.hbm [shape: f32[3,32], index: 2, kind: input, shape index: {}]
  %s3 = inlined_call_operand.hbm [shape: f32[32,32], index: 3, kind: input, shape index: {}]
  %s4 = inlined_call_operand.hbm [shape: f32[3,32], index: 4, kind: input, shape index: {}]
  %s5 = inlined_call_operand.hbm [shape: f32[32,128], index: 5, kind: input, shape index: {}]
  %s6 = inlined_call_operand.vmem [shape: f32[1,128], index: 6, kind: input, shape index: {}]
  %s7 = inlined_call_operand.hbm [shape: f32[8,128], index: 7, kind: output, shape index: {}]
  %s8 = sld [smem:[#allocation0]]
  $region62: #{tpu_custom_call.1} parent=0
    _
  %s10 = ssub.s32 1, %s8
  %s11 = scalar_select 0, %s10, %s8
  $region1: #{tpu_custom_call.1} parent=0
    #allocation2 [shape = 'u8[4096]{0}', space=vmem, size = 0x1000, scoped, tag = 'input window, operand 0, single buffered']
    #allocation3 [shape = 's32[1]{0}', space=sflag, size = 0x4, scoped, tag = 'scoped memory for tpu_custom_call.1']
    #allocation4 [shape = 's32[1]{0}', space=sflag, size = 0x4, scoped, tag = 'scoped memory for tpu_custom_call.1']
    #allocation5 [shape = 'u8[8192]{0}', space=vmem, size = 0x2000, scoped, tag = 'input window, operand 1, single buffered']
    #allocation6 [shape = 's32[1]{0}', space=sflag, size = 0x4, scoped, tag = 'scoped memory for tpu_custom_call.1']
    #allocation7 [shape = 'u8[2048]{0}', space=vmem, size = 0x800, scoped, tag = 'input window, operand 2, single buffered']
    #allocation8 [shape = 'u8[16384]{0}', space=vmem, size = 0x4000, scoped, tag = 'input window, operand 3, single buffered']
    #allocation9 [shape = 's32[1]{0}', space=sflag, size = 0x4, scoped, tag = 'scoped memory for tpu_custom_call.1']
    #allocation10 [shape = 'u8[2048]{0}', space=vmem, size = 0x800, scoped, tag = 'input window, operand 4, single buffered']
    #allocation11 [shape = 'u8[16384]{0}', space=vmem, size = 0x4000, scoped, tag = 'input window, operand 5, single buffered']
    #allocation12 [shape = 's32[1]{0}', space=sflag, size = 0x4, scoped, tag = 'scoped memory for tpu_custom_call.1']
    #allocation13 [shape = 'u8[4096]{0}', space=vmem, size = 0x1000, scoped, tag = 'output window, operand 0, single buffered']
    %12 = vsyncpa [#allocation3], 0
    %13 = vsyncpa [#allocation6], 0
    %14 = vsyncpa [#allocation9], 0
    %15 = vsyncpa [#allocation12], 0
    %16 = vsyncpa [#allocation4], 0
    // Predicated region
    $region2: #{tpu_custom_call.1} parent=1 // pred_check
      _
    $region3: #{tpu_custom_call.1} parent=1 // pred_check_branch
      %18 = sbr.rel (0) target = $region5
    $region4: #{tpu_custom_call.1} parent=1 // pred_region
      %20 = vsyncadd [#allocation3], 0
      %s22 = sshll.u32 %s0, 4
      %s23 = int_to_ptr.hbm [resolvable:$true] %s22
      %s24 = sshll.u32 [#allocation2], 4
      %s25 = int_to_ptr.vmem [resolvable:$true] %s24
      %27 = dma.hbm_to_vmem [thread:$0]  %s23, 128, %s25, [#allocation3]
    $region5: #{tpu_custom_call.1} parent=1 // pred_fallthru
      _
    // Predicated region
    $region6: #{tpu_custom_call.1} parent=1 // pred_check
      _
    $region7: #{tpu_custom_call.1} parent=1 // pred_check_branch
      %29 = sbr.rel (0) target = $region9
    $region8: #{tpu_custom_call.1} parent=1 // pred_region
      %31 = vsyncadd [#allocation6], 0
      %s32 = sshll.u32 %s1, 4
      %s33 = int_to_ptr.hbm [resolvable:$true] %s32
      %s34 = sshll.u32 [#allocation5], 4
      %s35 = int_to_ptr.vmem [resolvable:$true] %s34
      %40 = dma.hbm_to_vmem [thread:$0]  %s33, 256, %s35, [#allocation6], 128, 128, 8
    $region9: #{tpu_custom_call.1} parent=1 // pred_fallthru
      _
    // Predicated region
    $region10: #{tpu_custom_call.1} parent=1 // pred_check
      _
    $region11: #{tpu_custom_call.1} parent=1 // pred_check_branch
      %42 = sbr.rel (0) target = $region13
    $region12: #{tpu_custom_call.1} parent=1 // pred_region
      %44 = vsyncadd [#allocation6], 0
      %s46 = sshll.u32 %s2, 4
      %s47 = int_to_ptr.hbm [resolvable:$true] %s46
      %s48 = sshll.u32 [#allocation7], 4
      %s49 = int_to_ptr.vmem [resolvable:$true] %s48
      %51 = dma.hbm_to_vmem [thread:$0]  %s47, 64, %s49, [#allocation6]
    $region13: #{tpu_custom_call.1} parent=1 // pred_fallthru
      _
    // Predicated region
    $region14: #{tpu_custom_call.1} parent=1 // pred_check
      _
    $region15: #{tpu_custom_call.1} parent=1 // pred_check_branch
      %53 = sbr.rel (0) target = $region17
    $region16: #{tpu_custom_call.1} parent=1 // pred_region
      %55 = vsyncadd [#allocation9], 0
      %s56 = sshll.u32 %s3, 4
      %s57 = int_to_ptr.hbm [resolvable:$true] %s56
      %s58 = sshll.u32 [#allocation8], 4
      %s59 = int_to_ptr.vmem [resolvable:$true] %s58
      %64 = dma.hbm_to_vmem [thread:$0]  %s57, 512, %s59, [#allocation9], 128, 128, 8
    $region17: #{tpu_custom_call.1} parent=1 // pred_fallthru
      _
    // Predicated region
    $region18: #{tpu_custom_call.1} parent=1 // pred_check
      _
    $region19: #{tpu_custom_call.1} parent=1 // pred_check_branch
      %66 = sbr.rel (0) target = $region21
    $region20: #{tpu_custom_call.1} parent=1 // pred_region
      %68 = vsyncadd [#allocation9], 0
      %s70 = sshll.u32 %s4, 4
      %s71 = int_to_ptr.hbm [resolvable:$true] %s70
      %s72 = sshll.u32 [#allocation10], 4
      %s73 = int_to_ptr.vmem [resolvable:$true] %s72
      %75 = dma.hbm_to_vmem [thread:$0]  %s71, 64, %s73, [#allocation9]
    $region21: #{tpu_custom_call.1} parent=1 // pred_fallthru
      _
    // Predicated region
    $region22: #{tpu_custom_call.1} parent=1 // pred_check
      _
    $region23: #{tpu_custom_call.1} parent=1 // pred_check_branch
      %77 = sbr.rel (0) target = $region25
    $region24: #{tpu_custom_call.1} parent=1 // pred_region
      %79 = vsyncadd [#allocation12], 0
      %s80 = sshll.u32 %s5, 4
      %s81 = int_to_ptr.hbm [resolvable:$true] %s80
      %s82 = sshll.u32 [#allocation11], 4
      %s83 = int_to_ptr.vmem [resolvable:$true] %s82
      %88 = dma.hbm_to_vmem [thread:$0]  %s81, 512, %s83, [#allocation12], 128, 128, 8
    $region25: #{tpu_custom_call.1} parent=1 // pred_fallthru
      _
    // Predicated region
    $region26: #{tpu_custom_call.1} parent=1 // pred_check
      _
    $region27: #{tpu_custom_call.1} parent=1 // pred_check_branch
      %90 = sbr.rel (0) target = $region29
    $region28: #{tpu_custom_call.1} parent=1 // pred_region
      _
    $region29: #{tpu_custom_call.1} parent=1 // pred_fallthru
      _
    // Predicated region
    $region30: #{tpu_custom_call.1} parent=1 // pred_check
      _
    $region31: #{tpu_custom_call.1} parent=1 // pred_check_branch
      %92 = sbr.rel (0) target = $region33
    $region32: #{tpu_custom_call.1} parent=1 // pred_region
      %94 = dma.done [#allocation3], 128
    $region33: #{tpu_custom_call.1} parent=1 // pred_fallthru
      _
    // Predicated region
    $region34: #{tpu_custom_call.1} parent=1 // pred_check
      _
    $region35: #{tpu_custom_call.1} parent=1 // pred_check_branch
      %96 = sbr.rel (0) target = $region37
    $region36: #{tpu_custom_call.1} parent=1 // pred_region
      %98 = dma.done [#allocation6], 256
    $region37: #{tpu_custom_call.1} parent=1 // pred_fallthru
      _
    // Predicated region
    $region38: #{tpu_custom_call.1} parent=1 // pred_check
      _
    $region39: #{tpu_custom_call.1} parent=1 // pred_check_branch
      %100 = sbr.rel (0) target = $region41
    $region40: #{tpu_custom_call.1} parent=1 // pred_region
      %102 = dma.done [#allocation6], 64
    $region41: #{tpu_custom_call.1} parent=1 // pred_fallthru
      _
    // Predicated region
    $region42: #{tpu_custom_call.1} parent=1 // pred_check
      _
    $region43: #{tpu_custom_call.1} parent=1 // pred_check_branch
      %104 = sbr.rel (0) target = $region45
    $region44: #{tpu_custom_call.1} parent=1 // pred_region
      %106 = dma.done [#allocation9], 512
    $region45: #{tpu_custom_call.1} parent=1 // pred_fallthru
      _
    // Predicated region
    $region46: #{tpu_custom_call.1} parent=1 // pred_check
      _
    $region47: #{tpu_custom_call.1} parent=1 // pred_check_branch
      %108 = sbr.rel (0) target = $region49
    $region48: #{tpu_custom_call.1} parent=1 // pred_region
      %110 = dma.done [#allocation9], 64
    $region49: #{tpu_custom_call.1} parent=1 // pred_fallthru
      _
    // Predicated region
    $region50: #{tpu_custom_call.1} parent=1 // pred_check
      _
    $region51: #{tpu_custom_call.1} parent=1 // pred_check_branch
      %112 = sbr.rel (0) target = $region53
    $region52: #{tpu_custom_call.1} parent=1 // pred_region
      %114 = dma.done [#allocation12], 512
    $region53: #{tpu_custom_call.1} parent=1 // pred_fallthru
      _
    %v115 = vld [vmem:[#allocation2] sm:$0xff]
    %v116 = vld [vmem:[#allocation5] sm:$0xff]
    %v117 = vld [vmem:[#allocation5 + $0x8] sm:$0xff]
    %v118 = vld [vmem:[#allocation7] sm:$0x1]
    %v119 = vperm.slane %v118, 0
    %vm120 = vcmask 130048
    %v122 = vsel %vm120, %v115, 0
    %124 = vmatpush.msra.mxu0 0.0
    %125 = vmatpush.msra.mxu0 0.0
    %126 = vmatpush.msra.mxu0 0.0
    %127 = vmatpush.msra.mxu0 0.0
    %128 = vmatpush.msra.mxu0 0.0
    %129 = vmatpush.msra.mxu0 0.0
    %130 = vmatpush.msra.mxu0 0.0
    %131 = vmatpush.msra.mxu0 0.0
    %132 = vmatpush.msra.mxu0 0.0
    %133 = vmatpush.msra.mxu0 0.0
    %134 = vmatpush.msra.mxu0 0.0
    %135 = vmatpush.msra.mxu0 0.0
    %136 = vmatpush.msra.mxu0 0.0
    %137 = vmatpush.msra.mxu0 0.0
    %138 = vmatpush.msra.mxu0 %v117
    %139 = vmatpush.msra.mxu0 %v116
    %140 = vmatmul.f32.gmra.mxu0 %v122
    %v141 = vpop.f32.mrf.mxu0
    %v142 = vadd.f32 %v119, %v141
    %143 = vdwg.mxu0
    %v144 = vld [vmem:[#allocation7 + $0x1] sm:$0x1]
    %v145 = vld [vmem:[#allocation7 + $0x2] sm:$0x1]
    %vm146 = vcmask 261120
    %v147 = vsel %vm146, %v142, 0.0
    %148 = vadd.xlane.f32.xlu0 %v147
    %v149 = vpop.xlane.xlu0 %148
    %v150 = vrcp.pop 32.0
    %v151 = vmul.f32 32.0, %v150
    %v152 = vsub.f32 1.0, %v151
    %v153 = vmul.f32 %v150, %v152
    %v154 = vadd.f32 %v150, %v153
    %vm155 = vweird.f32 %v150
    %v156 = vsel %vm155, %v150, %v154
    %v157 = vmul.f32 %v149, %v156
    %v158 = vsub.f32 %v142, %v157
    %v159 = vmul.f32 %v158, %v158
    %v160 = vsel %vm146, %v159, 0.0
    %161 = vadd.xlane.f32.xlu0 %v160
    %v162 = vpop.xlane.xlu0 %161
    %v163 = vmul.f32 %v162, %v156
    %v164 = vadd.f32 %v163, 1e-05
    %v165 = vrsqrt.pop %v164
    %v166 = vmul.f32 %v165, %v164
    %v167 = vmul.f32 %v166, %v165
    %v168 = vmul.f32 0.5, %v167
    %v169 = vsub.f32 1.5, %v168
    %v170 = vmul.f32 %v165, %v169
    %vm171 = vweird.f32 %v164
    %vm172 = vweird.f32 %v165
    %vm173 = vmor %vm171, %vm172
    %v174 = vsel %vm173, %v165, %v170
    %v175 = vmul.f32 %v158, %v174
    %v176 = vperm.slane %v144, 0
    %v177 = vmul.f32 %v175, %v176
    %v178 = vperm.slane %v145, 0
    %v179 = vadd.f32 %v177, %v178
    %v180 = vmax.f32 %v179, 0.0
    %v181 = vld [vmem:[#allocation8] sm:$0xff]
    %v182 = vld [vmem:[#allocation8 + $0x8] sm:$0xff]
    %v183 = vld [vmem:[#allocation8 + $0x10] sm:$0xff]
    %v184 = vld [vmem:[#allocation8 + $0x18] sm:$0xff]
    %v185 = vld [vmem:[#allocation10] sm:$0x1]
    %v186 = vperm.slane %v185, 0
    %v188 = vsel %vm146, %v180, 0
    %190 = vmatpush.msra.mxu0 0.0
    %191 = vmatpush.msra.mxu0 0.0
    %192 = vmatpush.msra.mxu0 0.0
    %193 = vmatpush.msra.mxu0 0.0
    %194 = vmatpush.msra.mxu0 0.0
    %195 = vmatpush.msra.mxu0 0.0
    %196 = vmatpush.msra.mxu0 0.0
    %197 = vmatpush.msra.mxu0 0.0
    %198 = vmatpush.msra.mxu0 0.0
    %199 = vmatpush.msra.mxu0 0.0
    %200 = vmatpush.msra.mxu0 0.0
    %201 = vmatpush.msra.mxu0 0.0
    %202 = vmatpush.msra.mxu0 %v184
    %203 = vmatpush.msra.mxu0 %v183
    %204 = vmatpush.msra.mxu0 %v182
    %205 = vmatpush.msra.mxu0 %v181
    %206 = vmatmul.f32.gmra.mxu0 %v188
    %v207 = vpop.f32.mrf.mxu0
    %v208 = vadd.f32 %v186, %v207
    %209 = vdwg.mxu0
    %v210 = vld [vmem:[#allocation10 + $0x1] sm:$0x1]
    %v211 = vld [vmem:[#allocation10 + $0x2] sm:$0x1]
    %v212 = vsel %vm146, %v208, 0.0
    %213 = vadd.xlane.f32.xlu0 %v212
    %v214 = vpop.xlane.xlu0 %213
    %v215 = vmul.f32 %v214, %v156
    %v216 = vsub.f32 %v208, %v215
    %v217 = vmul.f32 %v216, %v216
    %v218 = vsel %vm146, %v217, 0.0
    %219 = vadd.xlane.f32.xlu0 %v218
    %v220 = vpop.xlane.xlu0 %219
    %v221 = vmul.f32 %v220, %v156
    %v222 = vadd.f32 %v221, 1e-05
    %v223 = vrsqrt.pop %v222
    %v224 = vmul.f32 %v223, %v222
    %v225 = vmul.f32 %v224, %v223
    %v226 = vmul.f32 0.5, %v225
    %v227 = vsub.f32 1.5, %v226
    %v228 = vmul.f32 %v223, %v227
    %vm229 = vweird.f32 %v222
    %vm230 = vweird.f32 %v223
    %vm231 = vmor %vm229, %vm230
    %v232 = vsel %vm231, %v223, %v228
    %v233 = vmul.f32 %v216, %v232
    %v234 = vperm.slane %v210, 0
    %v235 = vmul.f32 %v233, %v234
    %v236 = vperm.slane %v211, 0
    %v237 = vadd.f32 %v235, %v236
    %v238 = vmax.f32 %v237, 0.0
    %v239 = vld [vmem:[#allocation11] sm:$0xff]
    %v240 = vld [vmem:[#allocation11 + $0x8] sm:$0xff]
    %v241 = vld [vmem:[#allocation11 + $0x10] sm:$0xff]
    %v242 = vld [vmem:[#allocation11 + $0x18] sm:$0xff]
    %v243 = vld [vmem:[%s6] sm:$0x1]
    %v245 = vperm.slane %v243, 0
    %v248 = vsel %vm146, %v238, 0
    %250 = vmatpush.msra.mxu0 0.0
    %251 = vmatpush.msra.mxu0 0.0
    %252 = vmatpush.msra.mxu0 0.0
    %253 = vmatpush.msra.mxu0 0.0
    %254 = vmatpush.msra.mxu0 0.0
    %255 = vmatpush.msra.mxu0 0.0
    %256 = vmatpush.msra.mxu0 0.0
    %257 = vmatpush.msra.mxu0 0.0
    %258 = vmatpush.msra.mxu0 0.0
    %259 = vmatpush.msra.mxu0 0.0
    %260 = vmatpush.msra.mxu0 0.0
    %261 = vmatpush.msra.mxu0 0.0
    %262 = vmatpush.msra.mxu0 %v242
    %263 = vmatpush.msra.mxu0 %v241
    %264 = vmatpush.msra.mxu0 %v240
    %265 = vmatpush.msra.mxu0 %v239
    %266 = vmatmul.f32.gmra.mxu0 %v248
    %v267 = vpop.f32.mrf.mxu0
    %v268 = vadd.f32 %v245, %v267
    %269 = vdwg.mxu0
    %v270 = vtanh.pop %v268
    %271 = vst [vmem:[#allocation13] sm:$0xff] %v270
    // Predicated region
    $region54: #{tpu_custom_call.1} parent=1 // pred_check
      _
    $region55: #{tpu_custom_call.1} parent=1 // pred_check_branch
      %273 = sbr.rel (0) target = $region57
    $region56: #{tpu_custom_call.1} parent=1 // pred_region
      %275 = vsyncadd [#allocation4], 0
      %s277 = sshll.u32 [#allocation13], 4
      %s278 = int_to_ptr.vmem [resolvable:$true] %s277
      %s279 = sshll.u32 %s7, 4
      %s280 = int_to_ptr.hbm [resolvable:$true] %s279
      %282 = dma.vmem_to_hbm [thread:$0]  %s278, 128, %s280, [#allocation4]
    $region57: #{tpu_custom_call.1} parent=1 // pred_fallthru
      _
    // Predicated region
    $region58: #{tpu_custom_call.1} parent=1 // pred_check
      _
    $region59: #{tpu_custom_call.1} parent=1 // pred_check_branch
      %284 = sbr.rel (0) target = $region61
    $region60: #{tpu_custom_call.1} parent=1 // pred_region
      %286 = dma.done [#allocation4], 128
    $region61: #{tpu_custom_call.1} parent=1 // pred_fallthru
      _
    %287 = vsyncpa [#allocation3], 1
    %288 = vsyncpa [#allocation6], 1
    %289 = vsyncpa [#allocation9], 1
    %290 = vsyncpa [#allocation12], 1
    %291 = vsyncpa [#allocation4], 1

</llo_original>
